<compile_context>
chip_gen: v7x
topology: tpu7x:2x2x1
jax: 0.10.0
libtpu: 0.0.40
codegen_flags: <defaults>
</compile_context>

<pallas_src>
import math
from dataclasses import dataclass

import jax
import jax.numpy as jnp
from jax.experimental import pallas as pl
from jax.experimental.pallas import tpu as pltpu


@dataclass(frozen=True)
class Params:
    input_size: int = 32
    hidden_size: int = 32
    action_size: int = 4
    hidden_layers: int = 2   # this script implements the 2-hidden-layer branch


# ----------------------------------------------------------------------------
# Pallas kernel: one grid step = one chunk of T_CHUNK LSTMCell steps
# ----------------------------------------------------------------------------
def lstm_qnet_chunk_kernel(x_ref, hc0_ref, w_ihT_ref, w_hhT_ref, b_g_ref,
                           w12_ref, b12_ref, q_ref, hc_out_ref,
                           hx_s, cx_s, h_all):
    c = pl.program_id(0)
    TC, B, I = x_ref.shape
    H = hx_s.shape[-1]

    # Load the initial recurrent state into VMEM scratch on the first chunk.
    @pl.when(c == 0)
    def _():
        hx_s[...] = hc0_ref[0]
        cx_s[...] = hc0_ref[1]

    # ---- chunk-level input projection (hoisted out of the recurrence) ----
    # One MXU matmul for all T_CHUNK steps: [TC*B, I] x [I, 4H] (+ fused bias).
    x_flat = x_ref[...].reshape(TC * B, I)
    pre_gates = (jnp.dot(x_flat, w_ihT_ref[...],
                         preferred_element_type=jnp.float32)
                 + b_g_ref[...])                                   # (TC*B, 4H)

    w_hhT = w_hhT_ref[...]                                         # (H, 4H)
    hx = hx_s[...]                                                 # (B, H)
    cx = cx_s[...]                                                 # (B, H)

    # ---- fully unrolled recurrence: only hx @ W_hh^T is serial per step ----
    for t in range(TC):
        gates = pre_gates[t * B:(t + 1) * B, :] + jnp.dot(
            hx, w_hhT, preferred_element_type=jnp.float32)         # (B, 4H)
        # Gate nonlinearities on the full (B, 4H) tile, then slice.
        sig_all = jax.nn.sigmoid(gates)
        tanh_all = jnp.tanh(gates)
        i_g = sig_all[:, 0 * H:1 * H]
        f_g = sig_all[:, 1 * H:2 * H]
        o_g = sig_all[:, 3 * H:4 * H]
        g_g = tanh_all[:, 2 * H:3 * H]
        cx = f_g * cx + i_g * g_g
        hx = o_g * jnp.tanh(cx)
        h_all[t * B:(t + 1) * B, :] = hx   # stash for the deferred projection

    # Carry the recurrent state to the next chunk (stays in VMEM scratch).
    hx_s[...] = hx
    cx_s[...] = cx

    # ---- deferred, chunk-batched fcL2(fcL1(.)) projection ----
    q = (jnp.dot(h_all[...], w12_ref[...],
                 preferred_element_type=jnp.float32)
         + b12_ref[...])                                           # (TC*B, A)
    q_ref[...] = q.reshape(TC, B, -1).astype(q_ref.dtype)

    # ---- final recurrent state, written once at the last chunk ----
    @pl.when(c == pl.num_programs(0) - 1)
    def _():
        hc_out_ref[0] = hx
        hc_out_ref[1] = cx


# ----------------------------------------------------------------------------
# Wrappers
# ----------------------------------------------------------------------------
def lstm_qnetwork_rollout(weights, states, hx, cx, t_chunk=None):
    """Run T LSTM_QNETWORK forward steps inside one pallas_call.

    states: [T, B, I]; hx, cx: [B, H]
    Returns (q_seq [T, B, A], hx_final [B, H], cx_final [B, H]).
    """
    T, B, I = states.shape
    H = hx.shape[-1]
    A = weights["w12"].shape[-1]
    if t_chunk is None:
        t_chunk = T
    assert T % t_chunk == 0, "T must be divisible by the chunk size"
    n_chunks = T // t_chunk

    init_hc = jnp.stack([hx, cx], axis=0)                          # (2, B, H)

    q_seq, hc_final = pl.pallas_call(
        lstm_qnet_chunk_kernel,
        out_shape=(jax.ShapeDtypeStruct((T, B, A), jnp.float32),
                   jax.ShapeDtypeStruct((2, B, H), jnp.float32)),
        grid_spec=pltpu.PrefetchScalarGridSpec(
            num_scalar_prefetch=0,
            grid=(n_chunks,),
            in_specs=[
                # per-chunk streamed input block
                pl.BlockSpec((t_chunk, B, I), lambda c: (c, 0, 0)),
                # VMEM-resident operands (constant block index -> no re-DMA)
                pl.BlockSpec((2, B, H), lambda c: (0, 0, 0)),
                pl.BlockSpec((I, 4 * H), lambda c: (0, 0)),
                pl.BlockSpec((H, 4 * H), lambda c: (0, 0)),
                pl.BlockSpec((1, 4 * H), lambda c: (0, 0)),
                pl.BlockSpec((H, A), lambda c: (0, 0)),
                pl.BlockSpec((1, A), lambda c: (0, 0)),
            ],
            out_specs=[
                # per-chunk q output (one DMA per chunk)
                pl.BlockSpec((t_chunk, B, A), lambda c: (c, 0, 0)),
                # final (hx, cx), resident across the grid, written at the end
                pl.BlockSpec((2, B, H), lambda c: (0, 0, 0)),
            ],
            scratch_shapes=[
                pltpu.VMEM((B, H), jnp.float32),             # hx carry
                pltpu.VMEM((B, H), jnp.float32),             # cx carry
                pltpu.VMEM((t_chunk * B, H), jnp.float32),   # per-chunk hx stash
            ],
        ),
        compiler_params=pltpu.CompilerParams(
            # chunk axis carries hx/cx -> must be sequential ("arbitrary")
            dimension_semantics=("arbitrary",),
        ),
    )(states, init_hc, weights["w_ihT"], weights["w_hhT"],
      weights["b_gates"], weights["w12"], weights["b12"])

    return q_seq, hc_final[0], hc_final[1]


def lstm_qnetwork_forward(weights, state, hx, cx, learn_state=False):
    """Equivalent of LSTM_QNETWORK.forward((state, (hx, cx)), learn_state)."""
    q_seq, hx_new, cx_new = lstm_qnetwork_rollout(weights, state[None], hx, cx)
    q = q_seq[0]
    if learn_state is False:
        return q, (hx_new, cx_new)
    return q


# ----------------------------------------------------------------------------
# Deterministic parameter init (mirrors the PyTorch __init__ shapes / schemes)
# ----------------------------------------------------------------------------
def normalized_columns_initializer(key, shape, std=1.0):
    out = jax.random.normal(key, shape, dtype=jnp.float32)
    norm = jnp.sqrt(jnp.sum(out ** 2, axis=1, keepdims=True))
    return out * (std / norm)


def init_weights(params: Params, key):
    I, H, A = params.input_size, params.hidden_size, params.action_size
    k = jax.random.split(key, 4)

    # nn.LSTMCell default init: uniform(-1/sqrt(H), 1/sqrt(H)); biases zeroed.
    bound = 1.0 / math.sqrt(H)
    w_ih = jax.random.uniform(k[0], (4 * H, I), jnp.float32, -bound, bound)
    w_hh = jax.random.uniform(k[1], (4 * H, H), jnp.float32, -bound, bound)
    b_ih = jnp.zeros((4 * H,), jnp.float32)
    b_hh = jnp.zeros((4 * H,), jnp.float32)

    # fcL1 / fcL2: normalized_columns_initializer(std=0.01), bias = 0.
    w1 = normalized_columns_initializer(k[2], (H, H), std=0.01)
    b1 = jnp.zeros((H,), jnp.float32)
    w2 = normalized_columns_initializer(k[3], (A, H), std=0.01)
    b2 = jnp.zeros((A,), jnp.float32)

    # --- packed / fused forms consumed by the kernel ---
    w_ihT = w_ih.T                                              # [I, 4H]
    w_hhT = w_hh.T                                              # [H, 4H]
    b_gates = (b_ih + b_hh).reshape(1, 4 * H)                   # [1, 4H]
    # No nonlinearity between fcL1 and fcL2 in the PyTorch module, so fuse:
    #   q = (h @ W1^T + b1) @ W2^T + b2 = h @ (W1^T W2^T) + (b1 @ W2^T + b2)
    w12 = w1.T @ w2.T                                           # [H, A]
    b12 = b1.reshape(1, H) @ w2.T + b2.reshape(1, A)            # [1, A]

    return {
        # raw (PyTorch-layout) weights, used by the pure-JAX reference
        "w_ih": w_ih, "w_hh": w_hh, "b_ih": b_ih, "b_hh": b_hh,
        "w1": w1, "b1": b1, "w2": w2, "b2": b2,
        # packed/fused weights, used by the Pallas kernel
        "w_ihT": w_ihT, "w_hhT": w_hhT, "b_gates": b_gates,
        "w12": w12, "b12": b12,
    }


# ----------------------------------------------------------------------------
# Pure-JAX reference (unfused, mirrors PyTorch exactly) for correctness check
# ----------------------------------------------------------------------------
def reference_step(weights, state, hx, cx):
    H = hx.shape[-1]
    gates = (state @ weights["w_ih"].T + weights["b_ih"]
             + hx @ weights["w_hh"].T + weights["b_hh"])
    i = jax.nn.sigmoid(gates[:, 0 * H:1 * H])
    f = jax.nn.sigmoid(gates[:, 1 * H:2 * H])
    g = jnp.tanh(gates[:, 2 * H:3 * H])
    o = jax.nn.sigmoid(gates[:, 3 * H:4 * H])
    cx_new = f * cx + i * g
    hx_new = o * jnp.tanh(cx_new)
    x = hx_new @ weights["w1"].T + weights["b1"]
    q = x @ weights["w2"].T + weights["b2"]
    return q, hx_new, cx_new


def reference_rollout(weights, states, hx, cx):
    qs = []
    for t in range(states.shape[0]):
        q, hx, cx = reference_step(weights, states[t], hx, cx)
        qs.append(q)
    return jnp.stack(qs, axis=0), hx, cx


if __name__ == "__main__":
    params = Params(input_size=32, hidden_size=32, action_size=4, hidden_layers=2)
    B, T = 2, 8

    key = jax.random.PRNGKey(0)
    k_w, k_s, k_h, k_c = jax.random.split(key, 4)

    weights = init_weights(params, k_w)
    states = jax.random.normal(k_s, (T, B, params.input_size), jnp.float32)
    hx0 = jax.random.normal(k_h, (B, params.hidden_size), jnp.float32)
    cx0 = jax.random.normal(k_c, (B, params.hidden_size), jnp.float32)

    # Single-step path: exact LSTM_QNETWORK.forward semantics (learn_state=False).
    q1, (hx1, cx1) = lstm_qnetwork_forward(weights, states[0], hx0, cx0,
                                           learn_state=False)
    jax.block_until_ready((q1, hx1, cx1))

    q1_ref, hx1_ref, cx1_ref = reference_step(weights, states[0], hx0, cx0)
    assert jnp.allclose(q1, q1_ref, atol=1e-5), "single-step q mismatch"
    assert jnp.allclose(hx1, hx1_ref, atol=1e-5), "single-step hx mismatch"
    assert jnp.allclose(cx1, cx1_ref, atol=1e-5), "single-step cx mismatch"

    q_seq_ref, hxT_ref, cxT_ref = reference_rollout(weights, states, hx0, cx0)

    # Full-chunk rollout: grid=(1,), all T steps unrolled inside one body.
    q_seq, hxT, cxT = lstm_qnetwork_rollout(weights, states, hx0, cx0, t_chunk=T)
    jax.block_until_ready((q_seq, hxT, cxT))
    assert jnp.allclose(q_seq, q_seq_ref, atol=1e-4), "rollout q mismatch"
    assert jnp.allclose(hxT, hxT_ref, atol=1e-4), "rollout hx mismatch"
    assert jnp.allclose(cxT, cxT_ref, atol=1e-4), "rollout cx mismatch"

    # Multi-chunk rollout: grid=(2,), exercises the VMEM hx/cx carry across chunks.
    q_seq_c, hxT_c, cxT_c = lstm_qnetwork_rollout(weights, states, hx0, cx0,
                                                  t_chunk=T // 2)
    jax.block_until_ready((q_seq_c, hxT_c, cxT_c))
    assert jnp.allclose(q_seq_c, q_seq_ref, atol=1e-4), "chunked q mismatch"
    assert jnp.allclose(hxT_c, hxT_ref, atol=1e-4), "chunked hx mismatch"
    assert jnp.allclose(cxT_c, cxT_ref, atol=1e-4), "chunked cx mismatch"

    print("KERNEL_OK")
</pallas_src>

<mosaic_0001>
module attributes {stable_mosaic.version = 11 : i64} {
  func.func @lstm_qnet_chunk_kernel(%arg0: i32, %arg1: memref<1x2x32xf32, #tpu.memory_space<vmem>>, %arg2: memref<2x2x32xf32, #tpu.memory_space<vmem>>, %arg3: memref<32x128xf32, #tpu.memory_space<vmem>>, %arg4: memref<32x128xf32, #tpu.memory_space<vmem>>, %arg5: memref<1x128xf32, #tpu.memory_space<vmem>>, %arg6: memref<32x4xf32, #tpu.memory_space<vmem>>, %arg7: memref<1x4xf32, #tpu.memory_space<vmem>>, %arg8: memref<1x2x4xf32, #tpu.memory_space<vmem>>, %arg9: memref<2x2x32xf32, #tpu.memory_space<vmem>>, %arg10: memref<2x32xf32, #tpu.memory_space<vmem>>, %arg11: memref<2x32xf32, #tpu.memory_space<vmem>>, %arg12: memref<2x32xf32, #tpu.memory_space<vmem>>) attributes {dimension_semantics = [#tpu.dimension_semantics<arbitrary>], iteration_bounds = array<i64: 1>, scalar_prefetch = 0 : i64, scratch_operands = 3 : i64, tpu.core_type = #tpu.core_type<tc>, window_params = [{transform_indices = @transform_0, window_bounds = array<i64: 1, 2, 32>}, {pipeline_mode = #tpu.pipeline_mode<synchronous>, transform_indices = @transform_1, window_bounds = array<i64: 2, 2, 32>}, {pipeline_mode = #tpu.pipeline_mode<synchronous>, transform_indices = @transform_2, window_bounds = array<i64: 32, 128>}, {pipeline_mode = #tpu.pipeline_mode<synchronous>, transform_indices = @transform_3, window_bounds = array<i64: 32, 128>}, {pipeline_mode = #tpu.pipeline_mode<synchronous>, transform_indices = @transform_4, window_bounds = array<i64: 1, 128>}, {pipeline_mode = #tpu.pipeline_mode<synchronous>, transform_indices = @transform_5, window_bounds = array<i64: 32, 4>}, {pipeline_mode = #tpu.pipeline_mode<synchronous>, transform_indices = @transform_6, window_bounds = array<i64: 1, 4>}, {transform_indices = @transform_7, window_bounds = array<i64: 1, 2, 4>}, {pipeline_mode = #tpu.pipeline_mode<synchronous>, transform_indices = @transform_8, window_bounds = array<i64: 2, 2, 32>}]} {
    %c0_i32 = arith.constant 0 : i32
    %0 = arith.cmpi eq, %arg0, %c0_i32 : i32
    %1 = arith.extui %0 : i1 to i32
    %c0_i32_0 = arith.constant 0 : i32
    %2 = arith.cmpi ne, %1, %c0_i32_0 : i32
    scf.if %2 {
      %c0_33 = arith.constant 0 : index
      %c0_34 = arith.constant 0 : index
      %c0_35 = arith.constant 0 : index
      %44 = vector.load %arg2[%c0_33, %c0_34, %c0_35] : memref<2x2x32xf32, #tpu.memory_space<vmem>>, vector<1x2x32xf32>
      %45 = vector.shape_cast %44 : vector<1x2x32xf32> to vector<2x32xf32>
      %c0_36 = arith.constant 0 : index
      %c0_37 = arith.constant 0 : index
      %46 = vector.load %arg10[%c0_36, %c0_37] : memref<2x32xf32, #tpu.memory_space<vmem>>, vector<2x32xf32>
      tpu.vector_store %arg10[%c0_36, %c0_37], %45 {strides = array<i32>} : memref<2x32xf32, #tpu.memory_space<vmem>>, vector<2x32xf32>,
      %c1 = arith.constant 1 : index
      %c0_38 = arith.constant 0 : index
      %c0_39 = arith.constant 0 : index
      %47 = vector.load %arg2[%c1, %c0_38, %c0_39] : memref<2x2x32xf32, #tpu.memory_space<vmem>>, vector<1x2x32xf32>
      %48 = vector.shape_cast %47 : vector<1x2x32xf32> to vector<2x32xf32>
      %c0_40 = arith.constant 0 : index
      %c0_41 = arith.constant 0 : index
      %49 = vector.load %arg11[%c0_40, %c0_41] : memref<2x32xf32, #tpu.memory_space<vmem>>, vector<2x32xf32>
      tpu.vector_store %arg11[%c0_40, %c0_41], %48 {strides = array<i32>} : memref<2x32xf32, #tpu.memory_space<vmem>>, vector<2x32xf32>,
    } else {
    }
    %c0 = arith.constant 0 : index
    %c0_1 = arith.constant 0 : index
    %c0_2 = arith.constant 0 : index
    %3 = vector.load %arg1[%c0, %c0_1, %c0_2] : memref<1x2x32xf32, #tpu.memory_space<vmem>>, vector<1x2x32xf32>
    %4 = vector.shape_cast %3 : vector<1x2x32xf32> to vector<2x32xf32>
    %c0_3 = arith.constant 0 : index
    %c0_4 = arith.constant 0 : index
    %5 = vector.load %arg3[%c0_3, %c0_4] : memref<32x128xf32, #tpu.memory_space<vmem>>, vector<32x128xf32>
    %cst = arith.constant dense<0.000000e+00> : vector<2x128xf32>
    %6 = tpu.matmul %4, %5, %cst {dimension_numbers = #tpu.dot_dimension_numbers<[1], [0], [0], [1], [0, 0, 1, 1], [], []>} : vector<2x32xf32>, vector<32x128xf32>, vector<2x128xf32> -> vector<2x128xf32>
    %c0_5 = arith.constant 0 : index
    %c0_6 = arith.constant 0 : index
    %7 = vector.load %arg5[%c0_5, %c0_6] : memref<1x128xf32, #tpu.memory_space<vmem>>, vector<1x128xf32>
    %8 = vector.broadcast %7 : vector<1x128xf32> to vector<2x128xf32>
    %9 = arith.addf %6, %8 : vector<2x128xf32>
    %c0_7 = arith.constant 0 : index
    %c0_8 = arith.constant 0 : index
    %10 = vector.load %arg4[%c0_7, %c0_8] : memref<32x128xf32, #tpu.memory_space<vmem>>, vector<32x128xf32>
    %c0_9 = arith.constant 0 : index
    %c0_10 = arith.constant 0 : index
    %11 = vector.load %arg10[%c0_9, %c0_10] : memref<2x32xf32, #tpu.memory_space<vmem>>, vector<2x32xf32>
    %c0_11 = arith.constant 0 : index
    %c0_12 = arith.constant 0 : index
    %12 = vector.load %arg11[%c0_11, %c0_12] : memref<2x32xf32, #tpu.memory_space<vmem>>, vector<2x32xf32>
    %cst_13 = arith.constant dense<0.000000e+00> : vector<2x128xf32>
    %13 = tpu.matmul %11, %10, %cst_13 {dimension_numbers = #tpu.dot_dimension_numbers<[1], [0], [0], [1], [0, 0, 1, 1], [], []>} : vector<2x32xf32>, vector<32x128xf32>, vector<2x128xf32> -> vector<2x128xf32>
    %14 = arith.addf %9, %13 : vector<2x128xf32>
    %15 = arith.negf %14 : vector<2x128xf32>
    %16 = math.exp %15 : vector<2x128xf32>
    %cst_14 = arith.constant 1.000000e+00 : f32
    %17 = vector.broadcast %cst_14 : f32 to vector<2x128xf32>
    %18 = arith.addf %17, %16 : vector<2x128xf32>
    %19 = arith.divf %17, %18 : vector<2x128xf32>
    %20 = math.tanh %14 : vector<2x128xf32>
    %21 = vector.extract_strided_slice %19 {offsets = [0, 0], sizes = [2, 32], strides = [1, 1]} : vector<2x128xf32> to vector<2x32xf32>
    %22 = vector.extract_strided_slice %19 {offsets = [0, 32], sizes = [2, 32], strides = [1, 1]} : vector<2x128xf32> to vector<2x32xf32>
    %23 = vector.extract_strided_slice %19 {offsets = [0, 96], sizes = [2, 32], strides = [1, 1]} : vector<2x128xf32> to vector<2x32xf32>
    %24 = vector.extract_strided_slice %20 {offsets = [0, 64], sizes = [2, 32], strides = [1, 1]} : vector<2x128xf32> to vector<2x32xf32>
    %25 = arith.mulf %22, %12 : vector<2x32xf32>
    %26 = arith.mulf %21, %24 : vector<2x32xf32>
    %27 = arith.addf %25, %26 : vector<2x32xf32>
    %28 = math.tanh %27 : vector<2x32xf32>
    %29 = arith.mulf %23, %28 : vector<2x32xf32>
    %c0_15 = arith.constant 0 : index
    %c0_16 = arith.constant 0 : index
    %30 = vector.load %arg12[%c0_15, %c0_16] : memref<2x32xf32, #tpu.memory_space<vmem>>, vector<2x32xf32>
    tpu.vector_store %arg12[%c0_15, %c0_16], %29 {strides = array<i32>} : memref<2x32xf32, #tpu.memory_space<vmem>>, vector<2x32xf32>,
    %c0_17 = arith.constant 0 : index
    %c0_18 = arith.constant 0 : index
    %31 = vector.load %arg10[%c0_17, %c0_18] : memref<2x32xf32, #tpu.memory_space<vmem>>, vector<2x32xf32>
    tpu.vector_store %arg10[%c0_17, %c0_18], %29 {strides = array<i32>} : memref<2x32xf32, #tpu.memory_space<vmem>>, vector<2x32xf32>,
    %c0_19 = arith.constant 0 : index
    %c0_20 = arith.constant 0 : index
    %32 = vector.load %arg11[%c0_19, %c0_20] : memref<2x32xf32, #tpu.memory_space<vmem>>, vector<2x32xf32>
    tpu.vector_store %arg11[%c0_19, %c0_20], %27 {strides = array<i32>} : memref<2x32xf32, #tpu.memory_space<vmem>>, vector<2x32xf32>,
    %c0_21 = arith.constant 0 : index
    %c0_22 = arith.constant 0 : index
    %33 = vector.load %arg12[%c0_21, %c0_22] : memref<2x32xf32, #tpu.memory_space<vmem>>, vector<2x32xf32>
    %c0_23 = arith.constant 0 : index
    %c0_24 = arith.constant 0 : index
    %34 = vector.load %arg6[%c0_23, %c0_24] : memref<32x4xf32, #tpu.memory_space<vmem>>, vector<32x4xf32>
    %cst_25 = arith.constant dense<0.000000e+00> : vector<2x4xf32>
    %35 = tpu.matmul %33, %34, %cst_25 {dimension_numbers = #tpu.dot_dimension_numbers<[1], [0], [0], [1], [0, 0, 1, 1], [], []>} : vector<2x32xf32>, vector<32x4xf32>, vector<2x4xf32> -> vector<2x4xf32>
    %c0_26 = arith.constant 0 : index
    %c0_27 = arith.constant 0 : index
    %36 = vector.load %arg7[%c0_26, %c0_27] : memref<1x4xf32, #tpu.memory_space<vmem>>, vector<1x4xf32>
    %37 = vector.broadcast %36 : vector<1x4xf32> to vector<2x4xf32>
    %38 = arith.addf %35, %37 : vector<2x4xf32>
    %39 = vector.shape_cast %38 : vector<2x4xf32> to vector<1x2x4xf32>
    %c0_28 = arith.constant 0 : index
    %c0_29 = arith.constant 0 : index
    %c0_30 = arith.constant 0 : index
    %40 = vector.load %arg8[%c0_28, %c0_29, %c0_30] : memref<1x2x4xf32, #tpu.memory_space<vmem>>, vector<1x2x4xf32>
    tpu.vector_store %arg8[%c0_28, %c0_29, %c0_30], %39 {strides = array<i32>} : memref<1x2x4xf32, #tpu.memory_space<vmem>>, vector<1x2x4xf32>,
    %c0_i32_31 = arith.constant 0 : i32
    %41 = arith.cmpi eq, %arg0, %c0_i32_31 : i32
    %42 = arith.extui %41 : i1 to i32
    %c0_i32_32 = arith.constant 0 : i32
    %43 = arith.cmpi ne, %42, %c0_i32_32 : i32
    scf.if %43 {
      %c0_33 = arith.constant 0 : index
      %c0_34 = arith.constant 0 : index
      %c0_35 = arith.constant 0 : index
      %44 = vector.load %arg9[%c0_33, %c0_34, %c0_35] : memref<2x2x32xf32, #tpu.memory_space<vmem>>, vector<1x2x32xf32>
      %45 = vector.shape_cast %44 : vector<1x2x32xf32> to vector<2x32xf32>
      %46 = vector.shape_cast %29 : vector<2x32xf32> to vector<1x2x32xf32>
      tpu.vector_store %arg9[%c0_33, %c0_34, %c0_35], %46 {strides = array<i32>} : memref<2x2x32xf32, #tpu.memory_space<vmem>>, vector<1x2x32xf32>,
      %c1 = arith.constant 1 : index
      %c0_36 = arith.constant 0 : index
      %c0_37 = arith.constant 0 : index
      %47 = vector.load %arg9[%c1, %c0_36, %c0_37] : memref<2x2x32xf32, #tpu.memory_space<vmem>>, vector<1x2x32xf32>
      %48 = vector.shape_cast %47 : vector<1x2x32xf32> to vector<2x32xf32>
      %49 = vector.shape_cast %27 : vector<2x32xf32> to vector<1x2x32xf32>
      tpu.vector_store %arg9[%c1, %c0_36, %c0_37], %49 {strides = array<i32>} : memref<2x2x32xf32, #tpu.memory_space<vmem>>, vector<1x2x32xf32>,
    } else {
    }
    return
  }
  func.func @transform_0(%arg0: i32) -> (i32, i32, i32) {
    %c0_i32 = arith.constant 0 : i32
    %c0_i32_0 = arith.constant 0 : i32
    %c0_i32_1 = arith.constant 0 : i32
    return %arg0, %c0_i32, %c0_i32_0 : i32, i32, i32
  }
  func.func @transform_1(%arg0: i32) -> (i32, i32, i32) {
    %c0_i32 = arith.constant 0 : i32
    %c0_i32_0 = arith.constant 0 : i32
    %c0_i32_1 = arith.constant 0 : i32
    %c0_i32_2 = arith.constant 0 : i32
    return %c0_i32, %c0_i32_0, %c0_i32_1 : i32, i32, i32
  }
  func.func @transform_2(%arg0: i32) -> (i32, i32) {
    %c0_i32 = arith.constant 0 : i32
    %c0_i32_0 = arith.constant 0 : i32
    %c0_i32_1 = arith.constant 0 : i32
    return %c0_i32, %c0_i32_0 : i32, i32
  }
  func.func @transform_3(%arg0: i32) -> (i32, i32) {
    %c0_i32 = arith.constant 0 : i32
    %c0_i32_0 = arith.constant 0 : i32
    %c0_i32_1 = arith.constant 0 : i32
    return %c0_i32, %c0_i32_0 : i32, i32
  }
  func.func @transform_4(%arg0: i32) -> (i32, i32) {
    %c0_i32 = arith.constant 0 : i32
    %c0_i32_0 = arith.constant 0 : i32
    %c0_i32_1 = arith.constant 0 : i32
    return %c0_i32, %c0_i32_0 : i32, i32
  }
  func.func @transform_5(%arg0: i32) -> (i32, i32) {
    %c0_i32 = arith.constant 0 : i32
    %c0_i32_0 = arith.constant 0 : i32
    %c0_i32_1 = arith.constant 0 : i32
    return %c0_i32, %c0_i32_0 : i32, i32
  }
  func.func @transform_6(%arg0: i32) -> (i32, i32) {
    %c0_i32 = arith.constant 0 : i32
    %c0_i32_0 = arith.constant 0 : i32
    %c0_i32_1 = arith.constant 0 : i32
    return %c0_i32, %c0_i32_0 : i32, i32
  }
  func.func @transform_7(%arg0: i32) -> (i32, i32, i32) {
    %c0_i32 = arith.constant 0 : i32
    %c0_i32_0 = arith.constant 0 : i32
    %c0_i32_1 = arith.constant 0 : i32
    return %arg0, %c0_i32, %c0_i32_0 : i32, i32, i32
  }
  func.func @transform_8(%arg0: i32) -> (i32, i32, i32) {
    %c0_i32 = arith.constant 0 : i32
    %c0_i32_0 = arith.constant 0 : i32
    %c0_i32_1 = arith.constant 0 : i32
    %c0_i32_2 = arith.constant 0 : i32
    return %c0_i32, %c0_i32_0, %c0_i32_1 : i32, i32, i32
  }
}

</mosaic_0001>

<llo_original>
// kernel: tpu_custom_call.1
$region0: #{tpu_custom_call.1}
  #allocation0 [shape = 'u32[]', space=smem, size = 0x4, offset = 0x4, fixed_abs, tag = 'smem constant byte address 0x4 - core index']
  #allocation1 [shape = 'u32[144,128]{1,0:T(1,128)}', space=vmem, size = 0x12000, scoped, tag = 'internal scratch']
  #allocation2 [shape = 'f32[2,32]{1,0:T(2,128)}', space=vmem, size = 0x400, scoped, tag = 'scratch operand']
  #allocation3 [shape = 'f32[2,32]{1,0:T(2,128)}', space=vmem, size = 0x400, scoped, tag = 'scratch operand']
  #allocation4 [shape = 'f32[2,32]{1,0:T(2,128)}', space=vmem, size = 0x400, scoped, tag = 'scratch operand']
  %s0 = inlined_call_operand.vmem [shape: f32[1,2,32], index: 0, kind: input, shape index: {}]
  %s1 = inlined_call_operand.vmem [shape: f32[2,2,32], index: 1, kind: input, shape index: {}]
  %s2 = inlined_call_operand.vmem [shape: f32[32,128], index: 2, kind: input, shape index: {}]
  %s3 = inlined_call_operand.hbm [shape: f32[32,128], index: 3, kind: input, shape index: {}]
  %s4 = inlined_call_operand.vmem [shape: f32[1,128], index: 4, kind: input, shape index: {}]
  %s5 = inlined_call_operand.vmem [shape: f32[32,4], index: 5, kind: input, shape index: {}]
  %s6 = inlined_call_operand.vmem [shape: f32[1,4], index: 6, kind: input, shape index: {}]
  %s7 = inlined_call_operand.hbm [shape: f32[1,2,4], index: 7, kind: output, shape index: {0}]
  %s8 = inlined_call_operand.hbm [shape: f32[2,2,32], index: 8, kind: output, shape index: {1}]
  %9 = xla_tuple %s7, %s8
  %s10 = sld [smem:[#allocation0]]
  $region58: #{tpu_custom_call.1} parent=0
    _
  %s12 = ssub.s32 1, %s10
  %s13 = scalar_select 0, %s12, %s10
  $region1: #{tpu_custom_call.1} parent=0
    #allocation5 [shape = 'u8[16384]{0}', space=vmem, size = 0x4000, scoped, tag = 'input window, operand 3, single buffered']
    #allocation6 [shape = 's32[1]{0}', space=sflag, size = 0x4, scoped, tag = 'scoped memory for tpu_custom_call.1']
    #allocation7 [shape = 's32[1]{0}', space=sflag, size = 0x4, scoped, tag = 'scoped memory for tpu_custom_call.1']
    #allocation8 [shape = 'u8[1024]{0}', space=vmem, size = 0x400, scoped, tag = 'output window, operand 0, single buffered']
    #allocation9 [shape = 'u8[2048]{0}', space=vmem, size = 0x800, scoped, tag = 'output window, operand 1, single buffered']
    #allocation10 [shape = 's32[1]{0}', space=sflag, size = 0x4, scoped, tag = 'scoped memory for tpu_custom_call.1']
    %14 = vsyncpa [#allocation6], 0
    %15 = vsyncpa [#allocation7], 0
    %16 = vsyncpa [#allocation10], 0
    // Predicated region
    $region2: #{tpu_custom_call.1} parent=1 // pred_check
      _
    $region3: #{tpu_custom_call.1} parent=1 // pred_check_branch
      %18 = sbr.rel (0) target = $region5
    $region4: #{tpu_custom_call.1} parent=1 // pred_region
      _
    $region5: #{tpu_custom_call.1} parent=1 // pred_fallthru
      _
    // Predicated region
    $region6: #{tpu_custom_call.1} parent=1 // pred_check
      _
    $region7: #{tpu_custom_call.1} parent=1 // pred_check_branch
      %20 = sbr.rel (0) target = $region9
    $region8: #{tpu_custom_call.1} parent=1 // pred_region
      _
    $region9: #{tpu_custom_call.1} parent=1 // pred_fallthru
      _
    // Predicated region
    $region10: #{tpu_custom_call.1} parent=1 // pred_check
      _
    $region11: #{tpu_custom_call.1} parent=1 // pred_check_branch
      %22 = sbr.rel (0) target = $region13
    $region12: #{tpu_custom_call.1} parent=1 // pred_region
      _
    $region13: #{tpu_custom_call.1} parent=1 // pred_fallthru
      _
    // Predicated region
    $region14: #{tpu_custom_call.1} parent=1 // pred_check
      _
    $region15: #{tpu_custom_call.1} parent=1 // pred_check_branch
      %24 = sbr.rel (0) target = $region17
    $region16: #{tpu_custom_call.1} parent=1 // pred_region
      %s26 = ssub.s32 512, 512
      %27 = vsyncadd [#allocation6], %s26
      %s28 = sshll.u32 [#allocation5], 4
      %s29 = int_to_ptr.vmem [resolvable:$true] %s28
      %34 = dma.hbm_to_vmem [thread:$0]  %s3, 512, %s29, [#allocation6], 128, 128, 8
    $region17: #{tpu_custom_call.1} parent=1 // pred_fallthru
      _
    // Predicated region
    $region18: #{tpu_custom_call.1} parent=1 // pred_check
      _
    $region19: #{tpu_custom_call.1} parent=1 // pred_check_branch
      %36 = sbr.rel (0) target = $region21
    $region20: #{tpu_custom_call.1} parent=1 // pred_region
      _
    $region21: #{tpu_custom_call.1} parent=1 // pred_fallthru
      _
    // Predicated region
    $region22: #{tpu_custom_call.1} parent=1 // pred_check
      _
    $region23: #{tpu_custom_call.1} parent=1 // pred_check_branch
      %38 = sbr.rel (0) target = $region25
    $region24: #{tpu_custom_call.1} parent=1 // pred_region
      _
    $region25: #{tpu_custom_call.1} parent=1 // pred_fallthru
      _
    // Predicated region
    $region26: #{tpu_custom_call.1} parent=1 // pred_check
      _
    $region27: #{tpu_custom_call.1} parent=1 // pred_check_branch
      %40 = sbr.rel (0) target = $region29
    $region28: #{tpu_custom_call.1} parent=1 // pred_region
      _
    $region29: #{tpu_custom_call.1} parent=1 // pred_fallthru
      _
    // Predicated region
    $region30: #{tpu_custom_call.1} parent=1 // pred_check
      _
    $region31: #{tpu_custom_call.1} parent=1 // pred_check_branch
      %42 = sbr.rel (0) target = $region33
    $region32: #{tpu_custom_call.1} parent=1 // pred_region
      %43 = dma.done [#allocation6], 512
    $region33: #{tpu_custom_call.1} parent=1 // pred_fallthru
      _
    %p44 = scmp.eq.s32.totalorder 0, 0
    // Predicated region
    $region34: #{tpu_custom_call.1} parent=1 // pred_check
      %p45 = pneg %p44
    $region35: #{tpu_custom_call.1} parent=1 // pred_check_branch
      %47 = sbr.rel (%p45) target = $region37
    $region36: #{tpu_custom_call.1} parent=1 // pred_region
      %v48 = vld [vmem:[%s1] sm:$0x3]
      %vm49 = vcmask 254976
      %50 = vst.msk [vmem:[#allocation2] sm:$0x3] %vm49, %v48
      %s51 = scalar_lea.vmem %s1, 2
      %v52 = vld [vmem:[%s51] sm:$0x3]
      %53 = vst.msk [vmem:[#allocation3] sm:$0x3] %vm49, %v52
    $region37: #{tpu_custom_call.1} parent=1 // pred_fallthru
      _
    %v54 = vld [vmem:[%s0] sm:$0x3]
    %v55 = vld [vmem:[%s2] sm:$0xff]
    %v56 = vld [vmem:[%s2 + $0x8] sm:$0xff]
    %v57 = vld [vmem:[%s2 + $0x10] sm:$0xff]
    %v58 = vld [vmem:[%s2 + $0x18] sm:$0xff]
    %v59 = vld [vmem:[%s4] sm:$0x1]
    %v61 = vlaneseq
    %v62 = vshrl.u32 %v61, 7
    %v63 = vsub.s32 0, %v62
    %v64 = vrot.slane %v59, %v63
    %vm66 = vcmask 261120
    %v68 = vsel %vm66, %v54, 0
    %70 = vmatprep.subr.mxu0 0.0
    %71 = vmatpush1.msra.mxu0 %v55
    %72 = vmatprep.subr.mxu0 0.0
    %73 = vmatpush1.msra.mxu0 %v56
    %74 = vmatprep.subr.mxu0 0.0
    %75 = vmatpush1.msra.mxu0 %v57
    %76 = vmatprep.subr.mxu0 0.0
    %77 = vmatpush1.msra.mxu0 %v58
    %78 = vmatprep.subr.mxu0 0.0
    %79 = vmatpush1.msra.mxu0 0.0
    %80 = vmatprep.subr.mxu0 0.0
    %81 = vmatpush1.msra.mxu0 0.0
    %82 = vmatprep.subr.mxu0 0.0
    %83 = vmatpush1.msra.mxu0 0.0
    %84 = vmatprep.subr.mxu0 0.0
    %85 = vmatpush1.msra.mxu0 0.0
    %86 = vmatprep.subr.mxu0 0.0
    %87 = vmatpush1.msra.mxu0 0.0
    %88 = vmatprep.subr.mxu0 0.0
    %89 = vmatpush1.msra.mxu0 0.0
    %90 = vmatprep.subr.mxu0 0.0
    %91 = vmatpush1.msra.mxu0 0.0
    %92 = vmatprep.subr.mxu0 0.0
    %93 = vmatpush1.msra.mxu0 0.0
    %94 = vmatprep.subr.mxu0 0.0
    %95 = vmatpush1.msra.mxu0 0.0
    %96 = vmatprep.subr.mxu0 0.0
    %97 = vmatpush1.msra.mxu0 0.0
    %98 = vmatprep.subr.mxu0 0.0
    %99 = vmatpush1.msra.mxu0 0.0
    %100 = vmatprep.subr.mxu0 0.0
    %101 = vmatpush1.msra.mxu0 0.0
    %102 = vmatprep.subr.mxu0 0.0
    %103 = vmatpush1.msra.mxu0 0.0
    %104 = vmatprep.subr.mxu0 0.0
    %105 = vmatpush1.msra.mxu0 0.0
    %106 = vmatprep.subr.mxu0 0.0
    %107 = vmatpush1.msra.mxu0 0.0
    %108 = vmatprep.subr.mxu0 0.0
    %109 = vmatpush1.msra.mxu0 0.0
    %110 = vmatprep.subr.mxu0 0.0
    %111 = vmatpush1.msra.mxu0 0.0
    %112 = vmatprep.subr.mxu0 0.0
    %113 = vmatpush1.msra.mxu0 0.0
    %114 = vmatprep.subr.mxu0 0.0
    %115 = vmatpush1.msra.mxu0 0.0
    %116 = vmatprep.subr.mxu0 0.0
    %117 = vmatpush1.msra.mxu0 0.0
    %118 = vmatprep.subr.mxu0 0.0
    %119 = vmatpush1.msra.mxu0 0.0
    %120 = vmatprep.subr.mxu0 0.0
    %121 = vmatpush1.msra.mxu0 0.0
    %122 = vmatprep.subr.mxu0 0.0
    %123 = vmatpush1.msra.mxu0 0.0
    %124 = vmatprep.subr.mxu0 0.0
    %125 = vmatpush1.msra.mxu0 0.0
    %126 = vmatprep.subr.mxu0 0.0
    %127 = vmatpush1.msra.mxu0 0.0
    %128 = vmatprep.subr.mxu0 0.0
    %129 = vmatpush1.msra.mxu0 0.0
    %130 = vmatprep.subr.mxu0 0.0
    %131 = vmatpush1.msra.mxu0 0.0
    %132 = vmatprep.subr.mxu0 0.0
    %133 = vmatpush1.msra.mxu0 0.0
    %134 = vmatprep.mubr.f32.mxu0 0.0
    %135 = vmatmul.mubr.f32.gmra.mrb[0].mxu0 %v68
    %v136 = vpop.f32.mrb[0].mxu0
    %v137 = vadd.f32 %v64, %v136
    %v138 = vpop.f32.mrb[0].mxu0
    %139 = vdwg.mxu0
    %v140 = vld [vmem:[#allocation5] sm:$0xff]
    %v141 = vld [vmem:[#allocation5 + $0x8] sm:$0xff]
    %v142 = vld [vmem:[#allocation5 + $0x10] sm:$0xff]
    %v143 = vld [vmem:[#allocation5 + $0x18] sm:$0xff]
    %v144 = vld [vmem:[#allocation2] sm:$0x3]
    %v145 = vld [vmem:[#allocation3] sm:$0x3]
    %v147 = vsel %vm66, %v144, 0
    %149 = vmatprep.subr.mxu0 0.0
    %150 = vmatpush1.msra.mxu0 %v140
    %151 = vmatprep.subr.mxu0 0.0
    %152 = vmatpush1.msra.mxu0 %v141
    %153 = vmatprep.subr.mxu0 0.0
    %154 = vmatpush1.msra.mxu0 %v142
    %155 = vmatprep.subr.mxu0 0.0
    %156 = vmatpush1.msra.mxu0 %v143
    %157 = vmatprep.subr.mxu0 0.0
    %158 = vmatpush1.msra.mxu0 0.0
    %159 = vmatprep.subr.mxu0 0.0
    %160 = vmatpush1.msra.mxu0 0.0
    %161 = vmatprep.subr.mxu0 0.0
    %162 = vmatpush1.msra.mxu0 0.0
    %163 = vmatprep.subr.mxu0 0.0
    %164 = vmatpush1.msra.mxu0 0.0
    %165 = vmatprep.subr.mxu0 0.0
    %166 = vmatpush1.msra.mxu0 0.0
    %167 = vmatprep.subr.mxu0 0.0
    %168 = vmatpush1.msra.mxu0 0.0
    %169 = vmatprep.subr.mxu0 0.0
    %170 = vmatpush1.msra.mxu0 0.0
    %171 = vmatprep.subr.mxu0 0.0
    %172 = vmatpush1.msra.mxu0 0.0
    %173 = vmatprep.subr.mxu0 0.0
    %174 = vmatpush1.msra.mxu0 0.0
    %175 = vmatprep.subr.mxu0 0.0
    %176 = vmatpush1.msra.mxu0 0.0
    %177 = vmatprep.subr.mxu0 0.0
    %178 = vmatpush1.msra.mxu0 0.0
    %179 = vmatprep.subr.mxu0 0.0
    %180 = vmatpush1.msra.mxu0 0.0
    %181 = vmatprep.subr.mxu0 0.0
    %182 = vmatpush1.msra.mxu0 0.0
    %183 = vmatprep.subr.mxu0 0.0
    %184 = vmatpush1.msra.mxu0 0.0
    %185 = vmatprep.subr.mxu0 0.0
    %186 = vmatpush1.msra.mxu0 0.0
    %187 = vmatprep.subr.mxu0 0.0
    %188 = vmatpush1.msra.mxu0 0.0
    %189 = vmatprep.subr.mxu0 0.0
    %190 = vmatpush1.msra.mxu0 0.0
    %191 = vmatprep.subr.mxu0 0.0
    %192 = vmatpush1.msra.mxu0 0.0
    %193 = vmatprep.subr.mxu0 0.0
    %194 = vmatpush1.msra.mxu0 0.0
    %195 = vmatprep.subr.mxu0 0.0
    %196 = vmatpush1.msra.mxu0 0.0
    %197 = vmatprep.subr.mxu0 0.0
    %198 = vmatpush1.msra.mxu0 0.0
    %199 = vmatprep.subr.mxu0 0.0
    %200 = vmatpush1.msra.mxu0 0.0
    %201 = vmatprep.subr.mxu0 0.0
    %202 = vmatpush1.msra.mxu0 0.0
    %203 = vmatprep.subr.mxu0 0.0
    %204 = vmatpush1.msra.mxu0 0.0
    %205 = vmatprep.subr.mxu0 0.0
    %206 = vmatpush1.msra.mxu0 0.0
    %207 = vmatprep.subr.mxu0 0.0
    %208 = vmatpush1.msra.mxu0 0.0
    %209 = vmatprep.subr.mxu0 0.0
    %210 = vmatpush1.msra.mxu0 0.0
    %211 = vmatprep.subr.mxu0 0.0
    %212 = vmatpush1.msra.mxu0 0.0
    %213 = vmatprep.mubr.f32.mxu0 0.0
    %214 = vmatmul.mubr.f32.gmra.mrb[0].mxu0 %v147
    %v215 = vpop.f32.mrb[0].mxu0
    %v216 = vadd.f32 0.0, %v215
    %v217 = vpop.f32.mrb[0].mxu0
    %218 = vdwg.mxu0
    %v219 = vadd.f32 %v137, %v216
    %v220 = vxor.u32 %v219, 2147483648
    %v221 = vmul.f32 %v220, 1.442695
    %v222 = vpow.pop %v221
    %v223 = vadd.f32 %v222, 1.0
    %v224 = vrcp.pop %v223
    %v225 = vmul.f32 1.0, %v224
    %v226 = vtanh.pop %v219
    %228 = vrot.lane.b32.xlu0 %v145, 32
    %v229 = vpop.permute.xlu0 %228
    %v231 = vmul.f32 %v225, %v229
    %233 = vrot.lane.b32.xlu0 %v226, 64
    %v234 = vpop.permute.xlu0 %233
    %v236 = vmul.f32 %v225, %v234
    %238 = vrot.lane.b32.xlu0 %v236, 32
    %v239 = vpop.permute.xlu0 %238
    %v241 = vadd.f32 %v231, %v239
    %v242 = vtanh.pop %v241
    %244 = vrot.lane.b32.xlu0 %v242, 64
    %v245 = vpop.permute.xlu0 %244
    %v247 = vmul.f32 %v225, %v245
    %249 = vrot.lane.b32.xlu0 %v247, 32
    %v250 = vpop.permute.xlu0 %249
    %vm252 = vcmask 254976
    %253 = vst.msk [vmem:[#allocation4] sm:$0x3] %vm252, %v250
    %254 = vst.msk [vmem:[#allocation2] sm:$0x3] %vm252, %v250
    %256 = vrot.lane.b32.xlu0 %v241, 96
    %v257 = vpop.permute.xlu0 %256
    %259 = vst.msk [vmem:[#allocation3] sm:$0x3] %vm252, %v257
    %v260 = vld [vmem:[#allocation4] sm:$0x3]
    %v261 = vld [vmem:[%s5] sm:$0xff]
    %v262 = vld [vmem:[%s5 + $0x8] sm:$0xff]
    %v263 = vld [vmem:[%s5 + $0x10] sm:$0xff]
    %v264 = vld [vmem:[%s5 + $0x18] sm:$0xff]
    %v265 = vld [vmem:[%s6] sm:$0x1]
    %v267 = vlaneseq
    %v268 = vshrl.u32 %v267, 7
    %v269 = vsub.s32 0, %v268
    %v270 = vrot.slane %v265, %v269
    %v273 = vsel %vm66, %v260, 0
    %275 = vmatprep.subr.mxu0 0.0
    %276 = vmatpush1.msra.mxu0 %v261
    %277 = vmatprep.subr.mxu0 0.0
    %278 = vmatpush1.msra.mxu0 %v262
    %279 = vmatprep.subr.mxu0 0.0
    %280 = vmatpush1.msra.mxu0 %v263
    %281 = vmatprep.subr.mxu0 0.0
    %282 = vmatpush1.msra.mxu0 %v264
    %283 = vmatprep.subr.mxu0 0.0
    %284 = vmatpush1.msra.mxu0 0.0
    %285 = vmatprep.subr.mxu0 0.0
    %286 = vmatpush1.msra.mxu0 0.0
    %287 = vmatprep.subr.mxu0 0.0
    %288 = vmatpush1.msra.mxu0 0.0
    %289 = vmatprep.subr.mxu0 0.0
    %290 = vmatpush1.msra.mxu0 0.0
    %291 = vmatprep.subr.mxu0 0.0
    %292 = vmatpush1.msra.mxu0 0.0
    %293 = vmatprep.subr.mxu0 0.0
    %294 = vmatpush1.msra.mxu0 0.0
    %295 = vmatprep.subr.mxu0 0.0
    %296 = vmatpush1.msra.mxu0 0.0
    %297 = vmatprep.subr.mxu0 0.0
    %298 = vmatpush1.msra.mxu0 0.0
    %299 = vmatprep.subr.mxu0 0.0
    %300 = vmatpush1.msra.mxu0 0.0
    %301 = vmatprep.subr.mxu0 0.0
    %302 = vmatpush1.msra.mxu0 0.0
    %303 = vmatprep.subr.mxu0 0.0
    %304 = vmatpush1.msra.mxu0 0.0
    %305 = vmatprep.subr.mxu0 0.0
    %306 = vmatpush1.msra.mxu0 0.0
    %307 = vmatprep.subr.mxu0 0.0
    %308 = vmatpush1.msra.mxu0 0.0
    %309 = vmatprep.subr.mxu0 0.0
    %310 = vmatpush1.msra.mxu0 0.0
    %311 = vmatprep.subr.mxu0 0.0
    %312 = vmatpush1.msra.mxu0 0.0
    %313 = vmatprep.subr.mxu0 0.0
    %314 = vmatpush1.msra.mxu0 0.0
    %315 = vmatprep.subr.mxu0 0.0
    %316 = vmatpush1.msra.mxu0 0.0
    %317 = vmatprep.subr.mxu0 0.0
    %318 = vmatpush1.msra.mxu0 0.0
    %319 = vmatprep.subr.mxu0 0.0
    %320 = vmatpush1.msra.mxu0 0.0
    %321 = vmatprep.subr.mxu0 0.0
    %322 = vmatpush1.msra.mxu0 0.0
    %323 = vmatprep.subr.mxu0 0.0
    %324 = vmatpush1.msra.mxu0 0.0
    %325 = vmatprep.subr.mxu0 0.0
    %326 = vmatpush1.msra.mxu0 0.0
    %327 = vmatprep.subr.mxu0 0.0
    %328 = vmatpush1.msra.mxu0 0.0
    %329 = vmatprep.subr.mxu0 0.0
    %330 = vmatpush1.msra.mxu0 0.0
    %331 = vmatprep.subr.mxu0 0.0
    %332 = vmatpush1.msra.mxu0 0.0
    %333 = vmatprep.subr.mxu0 0.0
    %334 = vmatpush1.msra.mxu0 0.0
    %335 = vmatprep.subr.mxu0 0.0
    %336 = vmatpush1.msra.mxu0 0.0
    %337 = vmatprep.subr.mxu0 0.0
    %338 = vmatpush1.msra.mxu0 0.0
    %339 = vmatprep.mubr.f32.mxu0 0.0
    %340 = vmatmul.mubr.f32.gmra.mrb[0].mxu0 %v273
    %v341 = vpop.f32.mrb[0].mxu0
    %v342 = vadd.f32 %v270, %v341
    %v343 = vpop.f32.mrb[0].mxu0
    %344 = vdwg.mxu0
    %vm345 = vcmask 25600
    %346 = vst.msk [vmem:[#allocation8] sm:$0x3] %vm345, %v342
    // Predicated region
    $region38: #{tpu_custom_call.1} parent=1 // pred_check
      %p347 = pneg %p44
    $region39: #{tpu_custom_call.1} parent=1 // pred_check_branch
      %349 = sbr.rel (%p347) target = $region41
    $region40: #{tpu_custom_call.1} parent=1 // pred_region
      %350 = vst.msk [vmem:[#allocation9] sm:$0x3] %vm252, %v250
      %s351 = scalar_lea.vmem [#allocation9], 2
      %352 = vst.msk [vmem:[%s351] sm:$0x3] %vm252, %v257
    $region41: #{tpu_custom_call.1} parent=1 // pred_fallthru
      _
    // Predicated region
    $region42: #{tpu_custom_call.1} parent=1 // pred_check
      _
    $region43: #{tpu_custom_call.1} parent=1 // pred_check_branch
      %354 = sbr.rel (0) target = $region45
    $region44: #{tpu_custom_call.1} parent=1 // pred_region
      %s356 = ssub.s32 32, 32
      %357 = vsyncadd [#allocation7], %s356
      %s359 = sshll.u32 [#allocation8], 4
      %s360 = int_to_ptr.vmem [resolvable:$true] %s359
      %362 = dma.vmem_to_hbm [thread:$0]  %s360, 32, %s7, [#allocation7]
    $region45: #{tpu_custom_call.1} parent=1 // pred_fallthru
      _
    // Predicated region
    $region46: #{tpu_custom_call.1} parent=1 // pred_check
      _
    $region47: #{tpu_custom_call.1} parent=1 // pred_check_branch
      %364 = sbr.rel (0) target = $region49
    $region48: #{tpu_custom_call.1} parent=1 // pred_region
      %s366 = ssub.s32 64, 64
      %367 = vsyncadd [#allocation10], %s366
      %s368 = sshll.u32 [#allocation9], 4
      %s369 = int_to_ptr.vmem [resolvable:$true] %s368
      %374 = dma.vmem_to_hbm [thread:$0]  %s369, 64, %s8, [#allocation10], 32, 32, 2
    $region49: #{tpu_custom_call.1} parent=1 // pred_fallthru
      _
    // Predicated region
    $region50: #{tpu_custom_call.1} parent=1 // pred_check
      _
    $region51: #{tpu_custom_call.1} parent=1 // pred_check_branch
      %376 = sbr.rel (0) target = $region53
    $region52: #{tpu_custom_call.1} parent=1 // pred_region
      %377 = dma.done [#allocation7], 32
    $region53: #{tpu_custom_call.1} parent=1 // pred_fallthru
      _
    // Predicated region
    $region54: #{tpu_custom_call.1} parent=1 // pred_check
      _
    $region55: #{tpu_custom_call.1} parent=1 // pred_check_branch
      %379 = sbr.rel (0) target = $region57
    $region56: #{tpu_custom_call.1} parent=1 // pred_region
      %380 = dma.done [#allocation10], 64
    $region57: #{tpu_custom_call.1} parent=1 // pred_fallthru
      _
    %381 = vsyncpa [#allocation6], 1
    %382 = vsyncpa [#allocation7], 1
    %383 = vsyncpa [#allocation10], 1

</llo_original>
